<compile_context>
chip_gen: v6e
topology: v6e:2x2x1
jax: 0.10.0
libtpu: 0.0.40
codegen_flags: <defaults>
</compile_context>

<pallas_src>
import functools

import jax
import jax.numpy as jnp
from jax.experimental import pallas as pl
from jax.experimental.pallas import tpu as pltpu

LANE = 128


def _round_up(x: int, m: int) -> int:
    return ((x + m - 1) // m) * m


def mlp_kernel(x_ref, w1_ref, b1_ref, w2_ref, b2_ref, out_ref):
    """relu(relu(x @ W1 + b1) @ W2 + b2) on one (TILE_B, D) batch tile.

    x_ref  : (TILE_B, D)      f32   (cast to bf16 here, under the DMA)
    w1_ref : (D, H)           bf16  (pre-transposed: canonical (M,K)x(K,N))
    b1_ref : (1, H)           f32
    w2_ref : (H, N_pad)       bf16  (class dim zero-padded to 128 lanes)
    b2_ref : (1, N_pad)       f32
    out_ref: (TILE_B, N_pad)  bf16  (lane-dense slab, halved writeback)
    """
    x = x_ref[...].astype(jnp.bfloat16)

    # Layer 1: bf16 MXU inputs, fp32 accumulation, fp32 epilogue.
    h = jnp.dot(x, w1_ref[...], preferred_element_type=jnp.float32)
    h = jnp.maximum(h + b1_ref[...], 0.0)  # f32 epilogue (v5e has no bf16 VPU)

    # Layer 2: same recipe; store bf16.
    y = jnp.dot(h.astype(jnp.bfloat16), w2_ref[...],
                preferred_element_type=jnp.float32)
    out_ref[...] = jnp.maximum(y + b2_ref[...], 0.0).astype(out_ref.dtype)


def prepare_params(w1, b1, w2, b2):
    """One-time parameter prep (do this at load time, not per forward call).

    w1: (hidden, input)   -> (input, hidden)        bf16
    b1: (hidden,)         -> (1, hidden)            f32
    w2: (classes, hidden) -> (hidden, classes_pad)  bf16, padded to 128 lanes
    b2: (classes,)        -> (1, classes_pad)       f32
    """
    H, _D = w1.shape
    N = w2.shape[0]
    n_pad = max(LANE, _round_up(N, LANE))

    w1_t = w1.T.astype(jnp.bfloat16)                                   # (D, H)
    b1_r = b1.reshape(1, H).astype(jnp.float32)                        # (1, H)
    w2_t = jnp.pad(w2, ((0, n_pad - N), (0, 0))).T.astype(jnp.bfloat16)  # (H, n_pad)
    b2_r = jnp.pad(b2, (0, n_pad - N)).reshape(1, n_pad).astype(jnp.float32)
    return w1_t, b1_r, w2_t, b2_r


@functools.partial(jax.jit, static_argnames=("num_classes", "tile_b"))
def fashion_mnist_model_v1(x_nchw, w1_t, b1, w2_t, b2, *, num_classes,
                           tile_b=None):
    """JAX wrapper reproducing FashinMNISTModelV1.forward.

    x_nchw      : (B, C, H, W) float32
    w1_t/b1/... : outputs of prepare_params()
    tile_b      : batch rows per grid step. Default collapses toward a single
                  grid step (best on single-TC v5e/v6e); on dual-TC v7x pass
                  roughly ceil(B/2) so >=2 "parallel" steps feed both cores.
    returns     : (B, num_classes) float32
    """
    B = x_nchw.shape[0]
    D, H = w1_t.shape
    n_pad = w2_t.shape[1]

    # nn.Flatten() on NCHW -- pure reshape, stays f32 (cast happens in-kernel).
    x2d = x_nchw.reshape(B, D)

    if tile_b is None:
        tile_b = 512
    # Multiple of 16 sublanes (bf16-friendly output packing); no batch padding:
    # the ragged last tile is handled by Pallas OOB-masked loads/stores.
    tile_b = max(16, min(_round_up(int(tile_b), 16), _round_up(B, 16)))
    grid = (pl.cdiv(B, tile_b),)

    const = lambda i: (0, 0)  # weights/biases: same block every step -> resident

    flops = 2 * B * (D * H + H * n_pad)
    bytes_accessed = (
        B * D * 4            # x (f32 in)
        + D * H * 2 + H * 4  # w1 (bf16) + b1 (f32)
        + H * n_pad * 2 + n_pad * 4  # w2 + b2
        + B * n_pad * 2      # bf16 output slab
    )

    out_padded = pl.pallas_call(
        mlp_kernel,
        out_shape=jax.ShapeDtypeStruct((B, n_pad), jnp.bfloat16),
        grid=grid,
        in_specs=[
            pl.BlockSpec((tile_b, D), lambda i: (i, 0)),  # x: streamed per tile
            pl.BlockSpec((D, H), const),                  # w1: VMEM-resident
            pl.BlockSpec((1, H), const),                  # b1
            pl.BlockSpec((H, n_pad), const),              # w2
            pl.BlockSpec((1, n_pad), const),              # b2
        ],
        out_specs=pl.BlockSpec((tile_b, n_pad), lambda i: (i, 0)),
        compiler_params=pltpu.CompilerParams(
            dimension_semantics=("parallel",),
        ),
        cost_estimate=pl.CostEstimate(
            flops=flops, bytes_accessed=bytes_accessed, transcendentals=0
        ),
    )(x2d, w1_t, b1, w2_t, b2)

    # Strip the lane padding of the class dimension; return f32 like PyTorch.
    return out_padded[:, :num_classes].astype(jnp.float32)


if __name__ == "__main__":
    # FashionMNIST-like shapes: 1x28x28 -> 784 features, hidden=32, 10 classes.
    # Small batch; B=40 is NOT a multiple of tile_b to exercise the pad-free
    # ragged-last-tile path.
    B, C, H_img, W_img = 40, 1, 28, 28
    input_shape = C * H_img * W_img
    hidden_units = 32
    output_shape = 10
    TILE_B = 16  # -> grid=3 with a partial final tile

    key = jax.random.PRNGKey(0)
    kx, kw1, kb1, kw2, kb2 = jax.random.split(key, 5)

    x = jax.random.normal(kx, (B, C, H_img, W_img), dtype=jnp.float32)
    # PyTorch nn.Linear weight layout = (out_features, in_features).
    w1 = jax.random.normal(kw1, (hidden_units, input_shape), dtype=jnp.float32) * 0.05
    b1 = jax.random.normal(kb1, (hidden_units,), dtype=jnp.float32) * 0.05
    w2 = jax.random.normal(kw2, (output_shape, hidden_units), dtype=jnp.float32) * 0.05
    b2 = jax.random.normal(kb2, (output_shape,), dtype=jnp.float32) * 0.05

    # One-time parameter load (transpose / cast / pad happen once, not per call).
    params = prepare_params(w1, b1, w2, b2)

    out = fashion_mnist_model_v1(x, *params, num_classes=output_shape,
                                 tile_b=TILE_B)
    out = jax.block_until_ready(out)
    assert out.shape == (B, output_shape)

    # Reference 1: mirrors the kernel numerics (bf16 matmul inputs, f32
    # accumulate/epilogue, bf16 final store).
    f32 = jnp.float32
    x_r = x.reshape(B, -1).astype(jnp.bfloat16).astype(f32)
    w1_r = w1.astype(jnp.bfloat16).astype(f32)
    w2_r = w2.astype(jnp.bfloat16).astype(f32)
    h_r = jnp.maximum(x_r @ w1_r.T + b1, 0.0)
    ref_bf16 = jnp.maximum(h_r.astype(jnp.bfloat16).astype(f32) @ w2_r.T + b2, 0.0)
    ref_bf16 = ref_bf16.astype(jnp.bfloat16).astype(f32)
    assert jnp.allclose(out, ref_bf16, atol=2e-2, rtol=2e-2)

    # Reference 2: pure fp32 PyTorch-equivalent forward (loose tolerance for
    # the intentional bf16 matmul/output precision trade).
    h_f = jnp.maximum(x.reshape(B, -1) @ w1.T + b1, 0.0)
    ref_f32 = jnp.maximum(h_f @ w2.T + b2, 0.0)
    assert jnp.allclose(out, ref_f32, atol=5e-2, rtol=5e-2)

    print("KERNEL_OK")
</pallas_src>

<mosaic_0001>
module attributes {stable_mosaic.version = 11 : i64} {
  func.func @mlp_kernel(%arg0: i32, %arg1: memref<16x784xf32, #tpu.memory_space<vmem>>, %arg2: memref<784x32xbf16, #tpu.memory_space<vmem>>, %arg3: memref<1x32xf32, #tpu.memory_space<vmem>>, %arg4: memref<32x128xbf16, #tpu.memory_space<vmem>>, %arg5: memref<1x128xf32, #tpu.memory_space<vmem>>, %arg6: memref<16x128xbf16, #tpu.memory_space<vmem>>) attributes {dimension_semantics = [#tpu.dimension_semantics<parallel>], iteration_bounds = array<i64: 3>, scalar_prefetch = 0 : i64, scratch_operands = 0 : i64, tpu.core_type = #tpu.core_type<tc>, window_params = [{transform_indices = @transform_0, window_bounds = array<i64: 16, 784>}, {pipeline_mode = #tpu.pipeline_mode<synchronous>, transform_indices = @transform_1, window_bounds = array<i64: 784, 32>}, {pipeline_mode = #tpu.pipeline_mode<synchronous>, transform_indices = @transform_2, window_bounds = array<i64: 1, 32>}, {pipeline_mode = #tpu.pipeline_mode<synchronous>, transform_indices = @transform_3, window_bounds = array<i64: 32, 128>}, {pipeline_mode = #tpu.pipeline_mode<synchronous>, transform_indices = @transform_4, window_bounds = array<i64: 1, 128>}, {transform_indices = @transform_5, window_bounds = array<i64: 16, 128>}]} {
    %c0 = arith.constant 0 : index
    %c0_0 = arith.constant 0 : index
    %0 = vector.load %arg1[%c0, %c0_0] : memref<16x784xf32, #tpu.memory_space<vmem>>, vector<16x784xf32>
    %1 = arith.truncf %0 : vector<16x784xf32> to vector<16x784xbf16>
    %c0_1 = arith.constant 0 : index
    %c0_2 = arith.constant 0 : index
    %2 = vector.load %arg2[%c0_1, %c0_2] : memref<784x32xbf16, #tpu.memory_space<vmem>>, vector<784x32xbf16>
    %cst = arith.constant dense<0.000000e+00> : vector<16x32xf32>
    %3 = tpu.matmul %1, %2, %cst {dimension_numbers = #tpu.dot_dimension_numbers<[1], [0], [0], [1], [0, 0, 1, 1], [], []>} : vector<16x784xbf16>, vector<784x32xbf16>, vector<16x32xf32> -> vector<16x32xf32>
    %c0_3 = arith.constant 0 : index
    %c0_4 = arith.constant 0 : index
    %4 = vector.load %arg3[%c0_3, %c0_4] : memref<1x32xf32, #tpu.memory_space<vmem>>, vector<1x32xf32>
    %5 = vector.broadcast %4 : vector<1x32xf32> to vector<16x32xf32>
    %6 = arith.addf %3, %5 : vector<16x32xf32>
    %cst_5 = arith.constant 0.000000e+00 : f32
    %7 = vector.broadcast %cst_5 : f32 to vector<16x32xf32>
    %8 = arith.maximumf %6, %7 : vector<16x32xf32>
    %9 = arith.truncf %8 : vector<16x32xf32> to vector<16x32xbf16>
    %c0_6 = arith.constant 0 : index
    %c0_7 = arith.constant 0 : index
    %10 = vector.load %arg4[%c0_6, %c0_7] : memref<32x128xbf16, #tpu.memory_space<vmem>>, vector<32x128xbf16>
    %cst_8 = arith.constant dense<0.000000e+00> : vector<16x128xf32>
    %11 = tpu.matmul %9, %10, %cst_8 {dimension_numbers = #tpu.dot_dimension_numbers<[1], [0], [0], [1], [0, 0, 1, 1], [], []>} : vector<16x32xbf16>, vector<32x128xbf16>, vector<16x128xf32> -> vector<16x128xf32>
    %c0_9 = arith.constant 0 : index
    %c0_10 = arith.constant 0 : index
    %12 = vector.load %arg5[%c0_9, %c0_10] : memref<1x128xf32, #tpu.memory_space<vmem>>, vector<1x128xf32>
    %13 = vector.broadcast %12 : vector<1x128xf32> to vector<16x128xf32>
    %14 = arith.addf %11, %13 : vector<16x128xf32>
    %cst_11 = arith.constant 0.000000e+00 : f32
    %15 = vector.broadcast %cst_11 : f32 to vector<16x128xf32>
    %16 = arith.maximumf %14, %15 : vector<16x128xf32>
    %17 = arith.truncf %16 : vector<16x128xf32> to vector<16x128xbf16>
    %c0_12 = arith.constant 0 : index
    %c0_13 = arith.constant 0 : index
    %18 = vector.load %arg6[%c0_12, %c0_13] : memref<16x128xbf16, #tpu.memory_space<vmem>>, vector<16x128xbf16>
    tpu.vector_store %arg6[%c0_12, %c0_13], %17 {strides = array<i32>} : memref<16x128xbf16, #tpu.memory_space<vmem>>, vector<16x128xbf16>,
    return
  }
  func.func @transform_0(%arg0: i32) -> (i32, i32) {
    %c0_i32 = arith.constant 0 : i32
    %c0_i32_0 = arith.constant 0 : i32
    return %arg0, %c0_i32 : i32, i32
  }
  func.func @transform_1(%arg0: i32) -> (i32, i32) {
    %c0_i32 = arith.constant 0 : i32
    %c0_i32_0 = arith.constant 0 : i32
    %c0_i32_1 = arith.constant 0 : i32
    return %c0_i32, %c0_i32_0 : i32, i32
  }
  func.func @transform_2(%arg0: i32) -> (i32, i32) {
    %c0_i32 = arith.constant 0 : i32
    %c0_i32_0 = arith.constant 0 : i32
    %c0_i32_1 = arith.constant 0 : i32
    return %c0_i32, %c0_i32_0 : i32, i32
  }
  func.func @transform_3(%arg0: i32) -> (i32, i32) {
    %c0_i32 = arith.constant 0 : i32
    %c0_i32_0 = arith.constant 0 : i32
    %c0_i32_1 = arith.constant 0 : i32
    return %c0_i32, %c0_i32_0 : i32, i32
  }
  func.func @transform_4(%arg0: i32) -> (i32, i32) {
    %c0_i32 = arith.constant 0 : i32
    %c0_i32_0 = arith.constant 0 : i32
    %c0_i32_1 = arith.constant 0 : i32
    return %c0_i32, %c0_i32_0 : i32, i32
  }
  func.func @transform_5(%arg0: i32) -> (i32, i32) {
    %c0_i32 = arith.constant 0 : i32
    %c0_i32_0 = arith.constant 0 : i32
    return %arg0, %c0_i32 : i32, i32
  }
}

</mosaic_0001>

<llo_original>
// kernel: fashion_mnist_model_v1.1
$region0: #{fashion_mnist_model_v1.1}
  #allocation0 [shape = 'u32[]', space=smem, size = 0x4, offset = 0x4, fixed_abs, tag = 'smem constant byte address 0x4 - core index']
  #allocation1 [shape = 'u32[144,128]{1,0:T(1,128)}', space=vmem, size = 0x12000, scoped, tag = 'internal scratch']
  %s0 = inlined_call_operand.vmem [shape: f32[40,784], index: 0, kind: input, shape index: {}]
  %s1 = inlined_call_operand.vmem [shape: bf16[784,32], index: 1, kind: input, shape index: {}]
  %s2 = inlined_call_operand.vmem [shape: f32[1,32], index: 2, kind: input, shape index: {}]
  %s3 = inlined_call_operand.vmem [shape: bf16[32,128], index: 3, kind: input, shape index: {}]
  %s4 = inlined_call_operand.vmem [shape: f32[1,128], index: 4, kind: input, shape index: {}]
  %s5 = inlined_call_operand.vmem [shape: bf16[40,128], index: 5, kind: output, shape index: {}]
  %s6 = sld [smem:[#allocation0]]
  $region97: #{fashion_mnist_model_v1.1} parent=0
    _
  %s8 = ssub.s32 1, %s6
  %s9 = scalar_select 0, %s8, %s6
  $region1: #{fashion_mnist_model_v1.1} parent=0
    #allocation2 [shape = 'u8[8192]{0}', space=vmem, size = 0x2000, scoped, tag = 'output window, operand 0']
    loop: start=0, step=1, limit=5
    $region2: #{fashion_mnist_model_v1.1} parent=1 // loop_pre_header
      _
    $region3: #{fashion_mnist_model_v1.1} parent=1 // loop_header
      %s11 = sphi 0, %s15
      %p12 = scmp.ge.s32.totalorder %s11, 5
      %s21 = sphi 0, %s23
      %s24 = sphi 0, %s21
      %s25 = sphi 0, %s24
      %s41 = sphi 0, %s25
      %s45 = sphi 0, %s45
      %s47 = sphi 0, %s45
      %s48 = sphi 0, %s47
      %s62 = sphi 0, %s48
      %s66 = sphi 0, %s66
      %s68 = sphi 0, %s66
      %s69 = sphi 0, %s68
      %s83 = sphi 0, %s69
      %s87 = sphi 0, %s87
      %s89 = sphi 0, %s87
      %s90 = sphi 0, %s89
      %s104 = sphi 0, %s90
      %s108 = sphi 0, %s108
      %s110 = sphi 0, %s108
      %s111 = sphi 0, %s110
      %s125 = sphi 0, %s111
      %s131 = sphi 0, %s133
      %s134 = sphi 0, %s131
      %s135 = sphi 0, %s134
      %s151 = sphi 0, %s135
    $region4: #{fashion_mnist_model_v1.1} parent=1 // loop_header_branch
      %14 = sbr.rel (%p12) target = $region8
    $region5: #{fashion_mnist_model_v1.1} parent=1 // loop_body
      %s16 = ssub.s32 %s11, 1
      %s17 = ssub.s32 %s11, 2
      %s18 = sadd.s32 %s11, 1
      %s19 = ssub.s32 %s11, %s18
      %p20 = scmp.eq.s32.totalorder %s19, 0
      %s22 = sadd.s32 %s21, 1
      %s23 = scalar_select %p20, %s21, %s22
      %p26 = pneg %p20
      %p27 = scmp.eq.s32.totalorder %s11, 2
      %p28 = por %p26, %p27
      %p29 = scmp.ne.s32.totalorder %s21, %s24
      %p30 = scmp.eq.s32.totalorder %s11, 0
      %p31 = por %p29, %p30
      %p32 = scmp.ne.s32.totalorder %s21, %s24
      %p33 = scmp.eq.s32.totalorder %s16, 2
      %p34 = por %p32, %p33
      %p35 = scmp.ne.s32.totalorder %s24, %s25
      %p36 = scmp.eq.s32.totalorder %s16, 0
      %p37 = por %p35, %p36
      %p38 = scmp.ne.s32.totalorder %s24, %s25
      %p39 = scmp.eq.s32.totalorder %s17, 2
      %p40 = por %p38, %p39
      %p42 = scmp.ne.s32.totalorder %s25, %s41
      %p43 = scmp.eq.s32.totalorder %s17, 0
      %p44 = por %p42, %p43
      %s46 = sadd.s32 %s45, 1
      %p49 = scmp.eq.s32.totalorder %s11, 2
      %p50 = scmp.ne.s32.totalorder %s45, %s47
      %p51 = scmp.eq.s32.totalorder %s11, 0
      %p52 = por %p50, %p51
      %p53 = scmp.ne.s32.totalorder %s45, %s47
      %p54 = scmp.eq.s32.totalorder %s16, 2
      %p55 = por %p53, %p54
      %p56 = scmp.ne.s32.totalorder %s47, %s48
      %p57 = scmp.eq.s32.totalorder %s16, 0
      %p58 = por %p56, %p57
      %p59 = scmp.ne.s32.totalorder %s47, %s48
      %p60 = scmp.eq.s32.totalorder %s17, 2
      %p61 = por %p59, %p60
      %p63 = scmp.ne.s32.totalorder %s48, %s62
      %p64 = scmp.eq.s32.totalorder %s17, 0
      %p65 = por %p63, %p64
      %s67 = sadd.s32 %s66, 1
      %p70 = scmp.eq.s32.totalorder %s11, 2
      %p71 = scmp.ne.s32.totalorder %s66, %s68
      %p72 = scmp.eq.s32.totalorder %s11, 0
      %p73 = por %p71, %p72
      %p74 = scmp.ne.s32.totalorder %s66, %s68
      %p75 = scmp.eq.s32.totalorder %s16, 2
      %p76 = por %p74, %p75
      %p77 = scmp.ne.s32.totalorder %s68, %s69
      %p78 = scmp.eq.s32.totalorder %s16, 0
      %p79 = por %p77, %p78
      %p80 = scmp.ne.s32.totalorder %s68, %s69
      %p81 = scmp.eq.s32.totalorder %s17, 2
      %p82 = por %p80, %p81
      %p84 = scmp.ne.s32.totalorder %s69, %s83
      %p85 = scmp.eq.s32.totalorder %s17, 0
      %p86 = por %p84, %p85
      %s88 = sadd.s32 %s87, 1
      %p91 = scmp.eq.s32.totalorder %s11, 2
      %p92 = scmp.ne.s32.totalorder %s87, %s89
      %p93 = scmp.eq.s32.totalorder %s11, 0
      %p94 = por %p92, %p93
      %p95 = scmp.ne.s32.totalorder %s87, %s89
      %p96 = scmp.eq.s32.totalorder %s16, 2
      %p97 = por %p95, %p96
      %p98 = scmp.ne.s32.totalorder %s89, %s90
      %p99 = scmp.eq.s32.totalorder %s16, 0
      %p100 = por %p98, %p99
      %p101 = scmp.ne.s32.totalorder %s89, %s90
      %p102 = scmp.eq.s32.totalorder %s17, 2
      %p103 = por %p101, %p102
      %p105 = scmp.ne.s32.totalorder %s90, %s104
      %p106 = scmp.eq.s32.totalorder %s17, 0
      %p107 = por %p105, %p106
      %s109 = sadd.s32 %s108, 1
      %p112 = scmp.eq.s32.totalorder %s11, 2
      %p113 = scmp.ne.s32.totalorder %s108, %s110
      %p114 = scmp.eq.s32.totalorder %s11, 0
      %p115 = por %p113, %p114
      %p116 = scmp.ne.s32.totalorder %s108, %s110
      %p117 = scmp.eq.s32.totalorder %s16, 2
      %p118 = por %p116, %p117
      %p119 = scmp.ne.s32.totalorder %s110, %s111
      %p120 = scmp.eq.s32.totalorder %s16, 0
      %p121 = por %p119, %p120
      %p122 = scmp.ne.s32.totalorder %s110, %s111
      %p123 = scmp.eq.s32.totalorder %s17, 2
      %p124 = por %p122, %p123
      %p126 = scmp.ne.s32.totalorder %s111, %s125
      %p127 = scmp.eq.s32.totalorder %s17, 0
      %p128 = por %p126, %p127
      %s129 = ssub.s32 %s11, %s18
      %p130 = scmp.eq.s32.totalorder %s129, 0
      %s132 = sadd.s32 %s131, 1
      %s133 = scalar_select %p130, %s131, %s132
      %p136 = pneg %p130
      %p137 = scmp.eq.s32.totalorder %s11, 2
      %p138 = por %p136, %p137
      %p139 = scmp.ne.s32.totalorder %s131, %s134
      %p140 = scmp.eq.s32.totalorder %s11, 0
      %p141 = por %p139, %p140
      %p142 = scmp.ne.s32.totalorder %s131, %s134
      %p143 = scmp.eq.s32.totalorder %s16, 2
      %p144 = por %p142, %p143
      %p145 = scmp.ne.s32.totalorder %s134, %s135
      %p146 = scmp.eq.s32.totalorder %s16, 0
      %p147 = por %p145, %p146
      %p148 = scmp.ne.s32.totalorder %s134, %s135
      %p149 = scmp.eq.s32.totalorder %s17, 2
      %p150 = por %p148, %p149
      %p152 = scmp.ne.s32.totalorder %s135, %s151
      %p153 = scmp.eq.s32.totalorder %s17, 0
      %p154 = por %p152, %p153
      %p155 = scmp.le.s32.totalorder 1, %s11
      %p156 = scmp.lt.s32.totalorder %s11, 4
      %p157 = pnand %p155, %p156
      %p158 = pneg %p157
      // Predicated region
      $region9: #{fashion_mnist_model_v1.1} parent=5 // pred_check
        _
      $region10: #{fashion_mnist_model_v1.1} parent=5 // pred_check_branch
        %160 = sbr.rel (%p157) target = $region12
      $region11: #{fashion_mnist_model_v1.1} parent=5 // pred_region
        %s161 = ssub.s32 %s11, 1
        // Predicated region
        $region13: #{fashion_mnist_model_v1.1} parent=11 // pred_check
          %p162 = pneg %p58
        $region14: #{fashion_mnist_model_v1.1} parent=11 // pred_check_branch
          %164 = sbr.rel (%p162) target = $region16
        $region15: #{fashion_mnist_model_v1.1} parent=11 // pred_region
          _
        $region16: #{fashion_mnist_model_v1.1} parent=11 // pred_fallthru
          _
        // Predicated region
        $region17: #{fashion_mnist_model_v1.1} parent=11 // pred_check
          %p165 = pneg %p79
        $region18: #{fashion_mnist_model_v1.1} parent=11 // pred_check_branch
          %167 = sbr.rel (%p165) target = $region20
        $region19: #{fashion_mnist_model_v1.1} parent=11 // pred_region
          _
        $region20: #{fashion_mnist_model_v1.1} parent=11 // pred_fallthru
          _
        // Predicated region
        $region21: #{fashion_mnist_model_v1.1} parent=11 // pred_check
          %p168 = pneg %p100
        $region22: #{fashion_mnist_model_v1.1} parent=11 // pred_check_branch
          %170 = sbr.rel (%p168) target = $region24
        $region23: #{fashion_mnist_model_v1.1} parent=11 // pred_region
          _
        $region24: #{fashion_mnist_model_v1.1} parent=11 // pred_fallthru
          _
        // Predicated region
        $region25: #{fashion_mnist_model_v1.1} parent=11 // pred_check
          %p171 = pneg %p121
        $region26: #{fashion_mnist_model_v1.1} parent=11 // pred_check_branch
          %173 = sbr.rel (%p171) target = $region28
        $region27: #{fashion_mnist_model_v1.1} parent=11 // pred_region
          _
        $region28: #{fashion_mnist_model_v1.1} parent=11 // pred_fallthru
          _
      $region12: #{fashion_mnist_model_v1.1} parent=5 // pred_fallthru
        _
      %p174 = scmp.lt.s32.totalorder %s11, 3
      // Predicated region
      $region29: #{fashion_mnist_model_v1.1} parent=5 // pred_check
        %p175 = pneg %p174
      $region30: #{fashion_mnist_model_v1.1} parent=5 // pred_check_branch
        %177 = sbr.rel (%p175) target = $region32
      $region31: #{fashion_mnist_model_v1.1} parent=5 // pred_region
        // Predicated region
        $region33: #{fashion_mnist_model_v1.1} parent=31 // pred_check
          %p178 = pneg %p31
        $region34: #{fashion_mnist_model_v1.1} parent=31 // pred_check_branch
          %180 = sbr.rel (%p178) target = $region36
        $region35: #{fashion_mnist_model_v1.1} parent=31 // pred_region
          %s181 = smul.u32 2, %s11
          %s182 = ssub.s32 5, %s181
          %p183 = scmp.lt.s32.totalorder %s182, 2
          %s184 = scalar_select %p183, %s182, 2
          %s185 = smul.u32 128, %s184
          %s186 = smul.u32 %s185, 7
          %p187 = scmp.lt.s32.totalorder %s181, 4
          %s188 = scalar_select %p187, %s181, 4
          %s189 = smul.addr %s188, 7
          %s190 = smul.addr %s189, 8
          %s191 = scalar_lea.vmem %s0, %s190
          %s192 = smul.u32 2, %s11
          %s193 = ssub.s32 5, %s192
          %p194 = scmp.lt.s32.totalorder %s193, 2
          %s195 = scalar_select %p194, %s193, 2
          %s196 = smul.u32 128, %s195
          %s197 = smul.u32 %s196, 7
        $region36: #{fashion_mnist_model_v1.1} parent=31 // pred_fallthru
          _
      $region32: #{fashion_mnist_model_v1.1} parent=5 // pred_fallthru
        _
      %p198 = scmp.le.s32.totalorder 1, %s11
      %p199 = scmp.lt.s32.totalorder %s11, 4
      %p200 = pnand %p198, %p199
      %p201 = pneg %p200
      // Predicated region
      $region37: #{fashion_mnist_model_v1.1} parent=5 // pred_check
        _
      $region38: #{fashion_mnist_model_v1.1} parent=5 // pred_check_branch
        %203 = sbr.rel (%p200) target = $region40
      $region39: #{fashion_mnist_model_v1.1} parent=5 // pred_region
        %s204 = ssub.s32 %s11, 1
        %s205 = smul.u32 2, %s16
        %s206 = ssub.s32 5, %s205
        %p207 = scmp.lt.s32.totalorder %s206, 2
        %s208 = scalar_select %p207, %s206, 2
        %s209 = smul.u32 128, %s208
        %s210 = smul.u32 %s209, 7
        %p211 = scmp.lt.s32.totalorder %s205, 4
        %s212 = scalar_select %p211, %s205, 4
        %s213 = smul.addr %s212, 7
        %s214 = smul.addr %s213, 8
        %s215 = scalar_lea.vmem %s0, %s214
        %p216 = pneg %p37
        %p217 = pneg %p34
        %p218 = pneg %p58
        %p219 = pneg %p55
        %p220 = pneg %p79
        %p221 = pneg %p76
        %p222 = pneg %p100
        %p223 = pneg %p97
        %p224 = pneg %p121
        %p225 = pneg %p118
        %p226 = pneg %p147
        %p227 = pneg %p144
        %s228 = sand.u32 %s134, 1
        %s229 = sand.u32 %s134, 1
        %s230 = smul.addr %s229, 8
        %s231 = scalar_lea.vmem [#allocation2], %s230
        %s232 = smul.u32 2, %s16
        %s233 = ssub.s32 5, %s232
        %p234 = scmp.lt.s32.totalorder %s233, 2
        %s235 = scalar_select %p234, %s233, 2
        %s236 = smul.u32 128, %s235
        %s237 = smul.u32 %s236, 7
        %p238 = scmp.lt.s32.totalorder %s232, 4
        %s239 = scalar_select %p238, %s232, 4
        %s240 = smul.addr %s239, 7
        %s241 = smul.addr %s240, 8
        %s242 = scalar_lea.vmem %s0, %s241
        %s243 = smul.u32 2, %s16
        %s244 = ssub.s32 5, %s243
        %p245 = scmp.lt.s32.totalorder %s244, 2
        %s246 = scalar_select %p245, %s244, 2
        %s247 = smul.u32 128, %s246
        %s248 = smul.u32 %s247, 7
        %s249 = smul.u32 2, %s16
        %s250 = ssub.s32 5, %s249
        %p251 = scmp.lt.s32.totalorder %s250, 2
        %s252 = scalar_select %p251, %s250, 2
        %s253 = smul.u32 64, %s252
        %v255 = vld [vmem:[%s242] sm:$0xff]
        %v256 = vld [vmem:[%s242 + $0x8] sm:$0xff]
        %v257 = vld [vmem:[%s242 + $0x10] sm:$0xff]
        %v258 = vld [vmem:[%s242 + $0x18] sm:$0xff]
        %v259 = vld [vmem:[%s242 + $0x20] sm:$0xff]
        %v260 = vld [vmem:[%s242 + $0x28] sm:$0xff]
        %v261 = vld [vmem:[%s242 + $0x30] sm:$0xff]
        %v262 = vld [vmem:[%s242 + $0x38] sm:$0xff]
        %v263 = vld [vmem:[%s242 + $0x40] sm:$0xff]
        %v264 = vld [vmem:[%s242 + $0x48] sm:$0xff]
        %v265 = vld [vmem:[%s242 + $0x50] sm:$0xff]
        %v266 = vld [vmem:[%s242 + $0x58] sm:$0xff]
        %v267 = vld [vmem:[%s242 + $0x60] sm:$0xff]
        %v268 = vld [vmem:[%s242 + $0x68] sm:$0xff]
        %v269 = vpack.c.bf16 %v262, %v255
        %v270 = vpack.c.bf16 %v263, %v256
        %v271 = vpack.c.bf16 %v264, %v257
        %v272 = vpack.c.bf16 %v265, %v258
        %v273 = vpack.c.bf16 %v266, %v259
        %v274 = vpack.c.bf16 %v267, %v260
        %v275 = vpack.c.bf16 %v268, %v261
        %v276 = vld [vmem:[%s1] sm:$0xf]
        %v277 = vld [vmem:[%s1 + $0x4] sm:$0xf]
        %v278 = vld [vmem:[%s1 + $0x8] sm:$0xf]
        %v279 = vld [vmem:[%s1 + $0xc] sm:$0xf]
        %v280 = vld [vmem:[%s1 + $0x10] sm:$0xf]
        %v281 = vld [vmem:[%s1 + $0x14] sm:$0xf]
        %v282 = vld [vmem:[%s1 + $0x18] sm:$0xf]
        %v283 = vld [vmem:[%s1 + $0x1c] sm:$0xf]
        %v284 = vld [vmem:[%s1 + $0x20] sm:$0xf]
        %v285 = vld [vmem:[%s1 + $0x24] sm:$0xf]
        %v286 = vld [vmem:[%s1 + $0x28] sm:$0xf]
        %v287 = vld [vmem:[%s1 + $0x2c] sm:$0xf]
        %v288 = vld [vmem:[%s1 + $0x30] sm:$0xf]
        %v289 = vld [vmem:[%s1 + $0x34] sm:$0xf]
        %v290 = vld [vmem:[%s1 + $0x38] sm:$0xf]
        %v291 = vld [vmem:[%s1 + $0x3c] sm:$0xf]
        %v292 = vld [vmem:[%s1 + $0x40] sm:$0xf]
        %v293 = vld [vmem:[%s1 + $0x44] sm:$0xf]
        %v294 = vld [vmem:[%s1 + $0x48] sm:$0xf]
        %v295 = vld [vmem:[%s1 + $0x4c] sm:$0xf]
        %v296 = vld [vmem:[%s1 + $0x50] sm:$0xf]
        %v297 = vld [vmem:[%s1 + $0x54] sm:$0xf]
        %v298 = vld [vmem:[%s1 + $0x58] sm:$0xf]
        %v299 = vld [vmem:[%s1 + $0x5c] sm:$0xf]
        %v300 = vld [vmem:[%s1 + $0x60] sm:$0xf]
        %v301 = vld [vmem:[%s1 + $0x64] sm:$0xf]
        %v302 = vld [vmem:[%s1 + $0x68] sm:$0xf]
        %v303 = vld [vmem:[%s1 + $0x6c] sm:$0xf]
        %v304 = vld [vmem:[%s1 + $0x70] sm:$0xf]
        %v305 = vld [vmem:[%s1 + $0x74] sm:$0xf]
        %v306 = vld [vmem:[%s1 + $0x78] sm:$0xf]
        %v307 = vld [vmem:[%s1 + $0x7c] sm:$0xf]
        %v308 = vld [vmem:[%s1 + $0x80] sm:$0xf]
        %v309 = vld [vmem:[%s1 + $0x84] sm:$0xf]
        %v310 = vld [vmem:[%s1 + $0x88] sm:$0xf]
        %v311 = vld [vmem:[%s1 + $0x8c] sm:$0xf]
        %v312 = vld [vmem:[%s1 + $0x90] sm:$0xf]
        %v313 = vld [vmem:[%s1 + $0x94] sm:$0xf]
        %v314 = vld [vmem:[%s1 + $0x98] sm:$0xf]
        %v315 = vld [vmem:[%s1 + $0x9c] sm:$0xf]
        %v316 = vld [vmem:[%s1 + $0xa0] sm:$0xf]
        %v317 = vld [vmem:[%s1 + $0xa4] sm:$0xf]
        %v318 = vld [vmem:[%s1 + $0xa8] sm:$0xf]
        %v319 = vld [vmem:[%s1 + $0xac] sm:$0xf]
        %v320 = vld [vmem:[%s1 + $0xb0] sm:$0xf]
        %v321 = vld [vmem:[%s1 + $0xb4] sm:$0xf]
        %v322 = vld [vmem:[%s1 + $0xb8] sm:$0xf]
        %v323 = vld [vmem:[%s1 + $0xbc] sm:$0xf]
        %v324 = vld [vmem:[%s1 + $0xc0] sm:$0xf]
        %v325 = vld [vmem:[%s1 + $0xc4] sm:$0xf]
        %v326 = vld [vmem:[%s1 + $0xc8] sm:$0xf]
        %v327 = vld [vmem:[%s1 + $0xcc] sm:$0xf]
        %v328 = vld [vmem:[%s1 + $0xd0] sm:$0xf]
        %v329 = vld [vmem:[%s1 + $0xd4] sm:$0xf]
        %v330 = vld [vmem:[%s1 + $0xd8] sm:$0xf]
        %v331 = vld [vmem:[%s1 + $0xdc] sm:$0xf]
        %v332 = vld [vmem:[%s1 + $0xe0] sm:$0xf]
        %v333 = vld [vmem:[%s1 + $0xe4] sm:$0xf]
        %v334 = vld [vmem:[%s1 + $0xe8] sm:$0xf]
        %v335 = vld [vmem:[%s1 + $0xec] sm:$0xf]
        %v336 = vld [vmem:[%s1 + $0xf0] sm:$0xf]
        %v337 = vld [vmem:[%s1 + $0xf4] sm:$0xf]
        %v338 = vld [vmem:[%s1 + $0xf8] sm:$0xf]
        %v339 = vld [vmem:[%s1 + $0xfc] sm:$0xf]
        %v340 = vld [vmem:[%s1 + $0x100] sm:$0xf]
        %v341 = vld [vmem:[%s1 + $0x104] sm:$0xf]
        %v342 = vld [vmem:[%s1 + $0x108] sm:$0xf]
        %v343 = vld [vmem:[%s1 + $0x10c] sm:$0xf]
        %v344 = vld [vmem:[%s1 + $0x110] sm:$0xf]
        %v345 = vld [vmem:[%s1 + $0x114] sm:$0xf]
        %v346 = vld [vmem:[%s1 + $0x118] sm:$0xf]
        %v347 = vld [vmem:[%s1 + $0x11c] sm:$0xf]
        %v348 = vld [vmem:[%s1 + $0x120] sm:$0xf]
        %v349 = vld [vmem:[%s1 + $0x124] sm:$0xf]
        %v350 = vld [vmem:[%s1 + $0x128] sm:$0xf]
        %v351 = vld [vmem:[%s1 + $0x12c] sm:$0xf]
        %v352 = vld [vmem:[%s1 + $0x130] sm:$0xf]
        %v353 = vld [vmem:[%s1 + $0x134] sm:$0xf]
        %v354 = vld [vmem:[%s1 + $0x138] sm:$0xf]
        %v355 = vld [vmem:[%s1 + $0x13c] sm:$0xf]
        %v356 = vld [vmem:[%s1 + $0x140] sm:$0xf]
        %v357 = vld [vmem:[%s1 + $0x144] sm:$0xf]
        %v358 = vld [vmem:[%s1 + $0x148] sm:$0xf]
        %v359 = vld [vmem:[%s1 + $0x14c] sm:$0xf]
        %v360 = vld [vmem:[%s1 + $0x150] sm:$0xf]
        %v361 = vld [vmem:[%s1 + $0x154] sm:$0xf]
        %v362 = vld [vmem:[%s1 + $0x158] sm:$0xf]
        %v363 = vld [vmem:[%s1 + $0x15c] sm:$0xf]
        %v364 = vld [vmem:[%s1 + $0x160] sm:$0xf]
        %v365 = vld [vmem:[%s1 + $0x164] sm:$0xf]
        %v366 = vld [vmem:[%s1 + $0x168] sm:$0xf]
        %v367 = vld [vmem:[%s1 + $0x16c] sm:$0xf]
        %v368 = vld [vmem:[%s1 + $0x170] sm:$0xf]
        %v369 = vld [vmem:[%s1 + $0x174] sm:$0xf]
        %v370 = vld [vmem:[%s1 + $0x178] sm:$0xf]
        %v371 = vld [vmem:[%s1 + $0x17c] sm:$0xf]
        %v372 = vld [vmem:[%s1 + $0x180] sm:$0xf]
        %v373 = vld [vmem:[%s1 + $0x184] sm:$0xf]
        %v374 = vld [vmem:[%s2] sm:$0x1]
        %v376 = vlaneseq
        %v377 = vshrl.u32 %v376, 7
        %v378 = vsub.s32 0, %v377
        %v379 = vrot.slane %v374, %v378
        %v479 = vunpack.c.l.b16 %v276
        %v480 = vunpack.c.l.b16 %v277
        %v481 = vunpack.c.l.b16 %v278
        %v482 = vunpack.c.l.b16 %v279
        %v483 = vunpack.c.l.b16 %v280
        %v484 = vunpack.c.l.b16 %v281
        %v485 = vunpack.c.l.b16 %v282
        %v486 = vunpack.c.l.b16 %v283
        %v487 = vunpack.c.l.b16 %v284
        %v488 = vunpack.c.l.b16 %v285
        %v489 = vunpack.c.l.b16 %v286
        %v490 = vunpack.c.l.b16 %v287
        %v491 = vunpack.c.l.b16 %v288
        %v492 = vunpack.c.l.b16 %v289
        %v493 = vunpack.c.l.b16 %v290
        %v494 = vunpack.c.l.b16 %v291
        %v495 = vunpack.c.l.b16 %v292
        %v496 = vunpack.c.l.b16 %v293
        %v497 = vunpack.c.l.b16 %v294
        %v498 = vunpack.c.l.b16 %v295
        %v499 = vunpack.c.l.b16 %v296
        %v500 = vunpack.c.l.b16 %v297
        %v501 = vunpack.c.l.b16 %v298
        %v502 = vunpack.c.l.b16 %v299
        %v503 = vunpack.c.l.b16 %v300
        %v504 = vunpack.c.l.b16 %v301
        %v505 = vunpack.c.l.b16 %v302
        %v506 = vunpack.c.l.b16 %v303
        %v507 = vunpack.c.l.b16 %v304
        %v508 = vunpack.c.l.b16 %v305
        %v509 = vunpack.c.l.b16 %v306
        %v510 = vunpack.c.l.b16 %v307
        %v511 = vunpack.c.l.b16 %v308
        %v512 = vunpack.c.l.b16 %v309
        %v513 = vunpack.c.l.b16 %v310
        %v514 = vunpack.c.l.b16 %v311
        %v515 = vunpack.c.l.b16 %v312
        %v516 = vunpack.c.l.b16 %v313
        %v517 = vunpack.c.l.b16 %v314
        %v518 = vunpack.c.l.b16 %v315
        %v519 = vunpack.c.l.b16 %v316
        %v520 = vunpack.c.l.b16 %v317
        %v521 = vunpack.c.l.b16 %v318
        %v522 = vunpack.c.l.b16 %v319
        %v523 = vunpack.c.l.b16 %v320
        %v524 = vunpack.c.l.b16 %v321
        %v525 = vunpack.c.l.b16 %v322
        %v526 = vunpack.c.l.b16 %v323
        %v527 = vunpack.c.l.b16 %v324
        %v528 = vunpack.c.l.b16 %v325
        %v529 = vunpack.c.l.b16 %v326
        %v530 = vunpack.c.l.b16 %v327
        %v531 = vunpack.c.l.b16 %v328
        %v532 = vunpack.c.l.b16 %v329
        %v533 = vunpack.c.l.b16 %v330
        %v534 = vunpack.c.l.b16 %v331
        %v535 = vunpack.c.l.b16 %v332
        %v536 = vunpack.c.l.b16 %v333
        %v537 = vunpack.c.l.b16 %v334
        %v538 = vunpack.c.l.b16 %v335
        %v539 = vunpack.c.l.b16 %v336
        %v540 = vunpack.c.l.b16 %v337
        %v541 = vunpack.c.l.b16 %v338
        %v542 = vunpack.c.l.b16 %v339
        %v543 = vunpack.c.l.b16 %v340
        %v544 = vunpack.c.l.b16 %v341
        %v545 = vunpack.c.l.b16 %v342
        %v546 = vunpack.c.l.b16 %v343
        %v547 = vunpack.c.l.b16 %v344
        %v548 = vunpack.c.l.b16 %v345
        %v549 = vunpack.c.l.b16 %v346
        %v550 = vunpack.c.l.b16 %v347
        %v551 = vunpack.c.l.b16 %v348
        %v552 = vunpack.c.l.b16 %v349
        %v553 = vunpack.c.l.b16 %v350
        %v554 = vunpack.c.l.b16 %v351
        %v555 = vunpack.c.l.b16 %v352
        %v556 = vunpack.c.l.b16 %v353
        %v557 = vunpack.c.l.b16 %v354
        %v558 = vunpack.c.l.b16 %v355
        %v559 = vunpack.c.l.b16 %v356
        %v560 = vunpack.c.l.b16 %v357
        %v561 = vunpack.c.l.b16 %v358
        %v562 = vunpack.c.l.b16 %v359
        %v563 = vunpack.c.l.b16 %v360
        %v564 = vunpack.c.l.b16 %v361
        %v565 = vunpack.c.l.b16 %v362
        %v566 = vunpack.c.l.b16 %v363
        %v567 = vunpack.c.l.b16 %v364
        %v568 = vunpack.c.l.b16 %v365
        %v569 = vunpack.c.l.b16 %v366
        %v570 = vunpack.c.l.b16 %v367
        %v571 = vunpack.c.l.b16 %v368
        %v572 = vunpack.c.l.b16 %v369
        %v573 = vunpack.c.l.b16 %v370
        %v574 = vunpack.c.l.b16 %v371
        %v575 = vunpack.c.l.b16 %v372
        %v576 = vunpack.c.l.b16 %v373
        %v577 = vpack.c.b16 %v480, %v479
        %v578 = vpack.c.b16 %v482, %v481
        %v579 = vpack.c.b16 %v484, %v483
        %v580 = vpack.c.b16 %v486, %v485
        %v581 = vpack.c.b16 %v488, %v487
        %v582 = vpack.c.b16 %v490, %v489
        %v583 = vpack.c.b16 %v492, %v491
        %v584 = vpack.c.b16 %v494, %v493
        %v585 = vpack.c.b16 %v496, %v495
        %v586 = vpack.c.b16 %v498, %v497
        %v587 = vpack.c.b16 %v500, %v499
        %v588 = vpack.c.b16 %v502, %v501
        %v589 = vpack.c.b16 %v504, %v503
        %v590 = vpack.c.b16 %v506, %v505
        %v591 = vpack.c.b16 %v508, %v507
        %v592 = vpack.c.b16 %v510, %v509
        %v593 = vpack.c.b16 %v512, %v511
        %v594 = vpack.c.b16 %v514, %v513
        %v595 = vpack.c.b16 %v516, %v515
        %v596 = vpack.c.b16 %v518, %v517
        %v597 = vpack.c.b16 %v520, %v519
        %v598 = vpack.c.b16 %v522, %v521
        %v599 = vpack.c.b16 %v524, %v523
        %v600 = vpack.c.b16 %v526, %v525
        %v601 = vpack.c.b16 %v528, %v527
        %v602 = vpack.c.b16 %v530, %v529
        %v603 = vpack.c.b16 %v532, %v531
        %v604 = vpack.c.b16 %v534, %v533
        %v605 = vpack.c.b16 %v536, %v535
        %v606 = vpack.c.b16 %v538, %v537
        %v607 = vpack.c.b16 %v540, %v539
        %v608 = vpack.c.b16 %v542, %v541
        %v609 = vpack.c.b16 %v544, %v543
        %v610 = vpack.c.b16 %v546, %v545
        %v611 = vpack.c.b16 %v548, %v547
        %v612 = vpack.c.b16 %v550, %v549
        %v613 = vpack.c.b16 %v552, %v551
        %v614 = vpack.c.b16 %v554, %v553
        %v615 = vpack.c.b16 %v556, %v555
        %v616 = vpack.c.b16 %v558, %v557
        %v617 = vpack.c.b16 %v560, %v559
        %v618 = vpack.c.b16 %v562, %v561
        %v619 = vpack.c.b16 %v564, %v563
        %v620 = vpack.c.b16 %v566, %v565
        %v621 = vpack.c.b16 %v568, %v567
        %v622 = vpack.c.b16 %v570, %v569
        %v623 = vpack.c.b16 %v572, %v571
        %v624 = vpack.c.b16 %v574, %v573
        %v625 = vpack.c.b16 %v576, %v575
        %vm675 = vcmask 130048
        %v677 = vsel %vm675, %v275, 0
        %679 = vmatprep.subr.bf16.mxu0 0
        %680 = vmatpush1.bf16.msra.mxu0 %v584
        %681 = vmatprep.subr.bf16.mxu0 0
        %682 = vmatpush1.bf16.msra.mxu0 %v583
        %683 = vmatprep.subr.bf16.mxu0 0
        %684 = vmatpush1.bf16.msra.mxu0 %v582
        %685 = vmatprep.subr.bf16.mxu0 0
        %686 = vmatpush1.bf16.msra.mxu0 %v581
        %687 = vmatprep.subr.bf16.mxu0 0
        %688 = vmatpush1.bf16.msra.mxu0 %v580
        %689 = vmatprep.subr.bf16.mxu0 0
        %690 = vmatpush1.bf16.msra.mxu0 %v579
        %691 = vmatprep.subr.bf16.mxu0 0
        %692 = vmatpush1.bf16.msra.mxu0 %v578
        %693 = vmatprep.subr.bf16.mxu0 0
        %694 = vmatpush1.bf16.msra.mxu0 %v577
        %695 = vmatprep.subr.bf16.mxu0 0
        %696 = vmatpush2.bf16.msra.mxu0 %v592
        %697 = vmatprep.subr.bf16.mxu0 0
        %698 = vmatpush2.bf16.msra.mxu0 %v591
        %699 = vmatprep.subr.bf16.mxu0 0
        %700 = vmatpush2.bf16.msra.mxu0 %v590
        %701 = vmatprep.subr.bf16.mxu0 0
        %702 = vmatpush2.bf16.msra.mxu0 %v589
        %703 = vmatprep.subr.bf16.mxu0 0
        %704 = vmatpush2.bf16.msra.mxu0 %v588
        %705 = vmatprep.subr.bf16.mxu0 0
        %706 = vmatpush2.bf16.msra.mxu0 %v587
        %707 = vmatprep.subr.bf16.mxu0 0
        %708 = vmatpush2.bf16.msra.mxu0 %v586
        %709 = vmatprep.subr.bf16.mxu0 0
        %710 = vmatpush2.bf16.msra.mxu0 %v585
        %711 = vmatprep.mubr.bf16.mxu0 %v270
        %712 = vmatmul.mubr.bf16.gmra.mxu0 %v269
        %v713 = vpop.f32.mrf.mxu0
        %v714 = vadd.f32 %v379, %v713
        %v715 = vpop.f32.mrf.mxu0
        %v716 = vpop.f32.mrf.mxu0
        %v717 = vadd.f32 %v379, %v716
        %v718 = vpop.f32.mrf.mxu0
        %719 = vdwg.mxu0
        %720 = vmatprep.subr.bf16.mxu0 0
        %721 = vmatpush1.bf16.msra.mxu0 %v600
        %722 = vmatprep.subr.bf16.mxu0 0
        %723 = vmatpush1.bf16.msra.mxu0 %v599
        %724 = vmatprep.subr.bf16.mxu0 0
        %725 = vmatpush1.bf16.msra.mxu0 %v598
        %726 = vmatprep.subr.bf16.mxu0 0
        %727 = vmatpush1.bf16.msra.mxu0 %v597
        %728 = vmatprep.subr.bf16.mxu0 0
        %729 = vmatpush1.bf16.msra.mxu0 %v596
        %730 = vmatprep.subr.bf16.mxu0 0
        %731 = vmatpush1.bf16.msra.mxu0 %v595
        %732 = vmatprep.subr.bf16.mxu0 0
        %733 = vmatpush1.bf16.msra.mxu0 %v594
        %734 = vmatprep.subr.bf16.mxu0 0
        %735 = vmatpush1.bf16.msra.mxu0 %v593
        %736 = vmatprep.subr.bf16.mxu0 0
        %737 = vmatpush2.bf16.msra.mxu0 %v608
        %738 = vmatprep.subr.bf16.mxu0 0
        %739 = vmatpush2.bf16.msra.mxu0 %v607
        %740 = vmatprep.subr.bf16.mxu0 0
        %741 = vmatpush2.bf16.msra.mxu0 %v606
        %742 = vmatprep.subr.bf16.mxu0 0
        %743 = vmatpush2.bf16.msra.mxu0 %v605
        %744 = vmatprep.subr.bf16.mxu0 0
        %745 = vmatpush2.bf16.msra.mxu0 %v604
        %746 = vmatprep.subr.bf16.mxu0 0
        %747 = vmatpush2.bf16.msra.mxu0 %v603
        %748 = vmatprep.subr.bf16.mxu0 0
        %749 = vmatpush2.bf16.msra.mxu0 %v602
        %750 = vmatprep.subr.bf16.mxu0 0
        %751 = vmatpush2.bf16.msra.mxu0 %v601
        %752 = vmatprep.mubr.bf16.mxu0 %v272
        %753 = vmatmul.mubr.bf16.gmra.mxu0 %v271
        %v754 = vpop.f32.mrf.mxu0
        %v755 = vadd.f32 %v714, %v754
        %v756 = vpop.f32.mrf.mxu0
        %v757 = vpop.f32.mrf.mxu0
        %v758 = vadd.f32 %v717, %v757
        %v759 = vpop.f32.mrf.mxu0
        %760 = vdwg.mxu0
        %761 = vmatprep.subr.bf16.mxu0 0
        %762 = vmatpush1.bf16.msra.mxu0 %v616
        %763 = vmatprep.subr.bf16.mxu0 0
        %764 = vmatpush1.bf16.msra.mxu0 %v615
        %765 = vmatprep.subr.bf16.mxu0 0
        %766 = vmatpush1.bf16.msra.mxu0 %v614
        %767 = vmatprep.subr.bf16.mxu0 0
        %768 = vmatpush1.bf16.msra.mxu0 %v613
        %769 = vmatprep.subr.bf16.mxu0 0
        %770 = vmatpush1.bf16.msra.mxu0 %v612
        %771 = vmatprep.subr.bf16.mxu0 0
        %772 = vmatpush1.bf16.msra.mxu0 %v611
        %773 = vmatprep.subr.bf16.mxu0 0
        %774 = vmatpush1.bf16.msra.mxu0 %v610
        %775 = vmatprep.subr.bf16.mxu0 0
        %776 = vmatpush1.bf16.msra.mxu0 %v609
        %777 = vmatprep.subr.bf16.mxu0 0
        %778 = vmatpush2.bf16.msra.mxu0 %v624
        %779 = vmatprep.subr.bf16.mxu0 0
        %780 = vmatpush2.bf16.msra.mxu0 %v623
        %781 = vmatprep.subr.bf16.mxu0 0
        %782 = vmatpush2.bf16.msra.mxu0 %v622
        %783 = vmatprep.subr.bf16.mxu0 0
        %784 = vmatpush2.bf16.msra.mxu0 %v621
        %785 = vmatprep.subr.bf16.mxu0 0
        %786 = vmatpush2.bf16.msra.mxu0 %v620
        %787 = vmatprep.subr.bf16.mxu0 0
        %788 = vmatpush2.bf16.msra.mxu0 %v619
        %789 = vmatprep.subr.bf16.mxu0 0
        %790 = vmatpush2.bf16.msra.mxu0 %v618
        %791 = vmatprep.subr.bf16.mxu0 0
        %792 = vmatpush2.bf16.msra.mxu0 %v617
        %793 = vmatprep.mubr.bf16.mxu0 %v274
        %794 = vmatmul.mubr.bf16.gmra.mxu0 %v273
        %v795 = vpop.f32.mrf.mxu0
        %v796 = vadd.f32 %v755, %v795
        %v797 = vpop.f32.mrf.mxu0
        %v798 = vpop.f32.mrf.mxu0
        %v799 = vadd.f32 %v758, %v798
        %v800 = vpop.f32.mrf.mxu0
        %801 = vdwg.mxu0
        %802 = vmatprep.subr.bf16.mxu0 0
        %803 = vmatpush1.bf16.msra.mxu0 0
        %804 = vmatprep.subr.bf16.mxu0 0
        %805 = vmatpush1.bf16.msra.mxu0 0
        %806 = vmatprep.subr.bf16.mxu0 0
        %807 = vmatpush1.bf16.msra.mxu0 0
        %808 = vmatprep.subr.bf16.mxu0 0
        %809 = vmatpush1.bf16.msra.mxu0 0
        %810 = vmatprep.subr.bf16.mxu0 0
        %811 = vmatpush1.bf16.msra.mxu0 0
        %812 = vmatprep.subr.bf16.mxu0 0
        %813 = vmatpush1.bf16.msra.mxu0 0
        %814 = vmatprep.subr.bf16.mxu0 0
        %815 = vmatpush1.bf16.msra.mxu0 0
        %816 = vmatprep.subr.bf16.mxu0 0
        %817 = vmatpush1.bf16.msra.mxu0 %v625
        %818 = vmatprep.subr.bf16.mxu0 0
        %819 = vmatpush2.bf16.msra.mxu0 0
        %820 = vmatprep.subr.bf16.mxu0 0
        %821 = vmatpush2.bf16.msra.mxu0 0
        %822 = vmatprep.subr.bf16.mxu0 0
        %823 = vmatpush2.bf16.msra.mxu0 0
        %824 = vmatprep.subr.bf16.mxu0 0
        %825 = vmatpush2.bf16.msra.mxu0 0
        %826 = vmatprep.subr.bf16.mxu0 0
        %827 = vmatpush2.bf16.msra.mxu0 0
        %828 = vmatprep.subr.bf16.mxu0 0
        %829 = vmatpush2.bf16.msra.mxu0 0
        %830 = vmatprep.subr.bf16.mxu0 0
        %831 = vmatpush2.bf16.msra.mxu0 0
        %832 = vmatprep.subr.bf16.mxu0 0
        %833 = vmatpush2.bf16.msra.mxu0 0
        %834 = vmatprep.mubr.bf16.mxu0 0
        %835 = vmatmul.mubr.bf16.gmra.mxu0 %v677
        %v836 = vpop.f32.mrf.mxu0
        %v837 = vadd.f32 %v796, %v836
        %v838 = vpop.f32.mrf.mxu0
        %v839 = vpop.f32.mrf.mxu0
        %v840 = vadd.f32 %v799, %v839
        %v841 = vpop.f32.mrf.mxu0
        %842 = vdwg.mxu0
        %v843 = vmax.f32 %v837, 0.0
        %v844 = vmax.f32 %v840, 0.0
        %v845 = vpack.c.bf16 %v844, %v843
        %v846 = vld [vmem:[%s3] sm:$0xf]
        %v847 = vld [vmem:[%s3 + $0x4] sm:$0xf]
        %v848 = vld [vmem:[%s3 + $0x8] sm:$0xf]
        %v849 = vld [vmem:[%s3 + $0xc] sm:$0xf]
        %v850 = vld [vmem:[%s4] sm:$0x1]
        %v852 = vlaneseq
        %v853 = vshrl.u32 %v852, 7
        %v854 = vsub.s32 0, %v853
        %v855 = vrot.slane %v850, %v854
        %v861 = vunpack.c.l.b16 %v846
        %v862 = vunpack.c.l.b16 %v847
        %v863 = vunpack.c.l.b16 %v848
        %v864 = vunpack.c.l.b16 %v849
        %v865 = vpack.c.b16 %v862, %v861
        %v866 = vpack.c.b16 %v864, %v863
        %vm869 = vcmask 261120
        %v871 = vsel %vm869, %v845, 0
        %873 = vmatprep.subr.bf16.mxu0 0
        %874 = vmatpush1.bf16.msra.mxu0 0
        %875 = vmatprep.subr.bf16.mxu0 0
        %876 = vmatpush1.bf16.msra.mxu0 0
        %877 = vmatprep.subr.bf16.mxu0 0
        %878 = vmatpush1.bf16.msra.mxu0 0
        %879 = vmatprep.subr.bf16.mxu0 0
        %880 = vmatpush1.bf16.msra.mxu0 0
        %881 = vmatprep.subr.bf16.mxu0 0
        %882 = vmatpush1.bf16.msra.mxu0 0
        %883 = vmatprep.subr.bf16.mxu0 0
        %884 = vmatpush1.bf16.msra.mxu0 0
        %885 = vmatprep.subr.bf16.mxu0 0
        %886 = vmatpush1.bf16.msra.mxu0 %v866
        %887 = vmatprep.subr.bf16.mxu0 0
        %888 = vmatpush1.bf16.msra.mxu0 %v865
        %889 = vmatprep.subr.bf16.mxu0 0
        %890 = vmatpush2.bf16.msra.mxu0 0
        %891 = vmatprep.subr.bf16.mxu0 0
        %892 = vmatpush2.bf16.msra.mxu0 0
        %893 = vmatprep.subr.bf16.mxu0 0
        %894 = vmatpush2.bf16.msra.mxu0 0
        %895 = vmatprep.subr.bf16.mxu0 0
        %896 = vmatpush2.bf16.msra.mxu0 0
        %897 = vmatprep.subr.bf16.mxu0 0
        %898 = vmatpush2.bf16.msra.mxu0 0
        %899 = vmatprep.subr.bf16.mxu0 0
        %900 = vmatpush2.bf16.msra.mxu0 0
        %901 = vmatprep.subr.bf16.mxu0 0
        %902 = vmatpush2.bf16.msra.mxu0 0
        %903 = vmatprep.subr.bf16.mxu0 0
        %904 = vmatpush2.bf16.msra.mxu0 0
        %905 = vmatprep.mubr.bf16.mxu0 0
        %906 = vmatmul.mubr.bf16.gmra.mxu0 %v871
        %v907 = vpop.f32.mrf.mxu0
        %v908 = vadd.f32 %v855, %v907
        %v909 = vpop.f32.mrf.mxu0
        %v910 = vpop.f32.mrf.mxu0
        %v911 = vadd.f32 %v855, %v910
        %v912 = vpop.f32.mrf.mxu0
        %913 = vdwg.mxu0
        %v914 = vmax.f32 %v908, 0.0
        %v915 = vmax.f32 %v911, 0.0
        %v916 = vpack.c.bf16 %v915, %v914
        %v918 = vunpack.c.l.b16 %v916
        %v919 = vunpack.c.h.b16 %v916
        %v920 = vpack.c.b16 %v918, %v918
        %v921 = vpack.c.b16 %v919, %v919
        %924 = vst [vmem:[%s231] sm:$0xf] %v920
        %925 = vst [vmem:[%s231 + $0x4] sm:$0xf] %v921
        %s926 = sand.u32 %s134, 1
        %s927 = sand.u32 %s134, 1
        %s928 = smul.addr %s927, 8
        %s929 = scalar_lea.vmem [#allocation2], %s928
        // Predicated region
        $region41: #{fashion_mnist_model_v1.1} parent=39 // pred_check
          %p930 = pneg %p144
        $region42: #{fashion_mnist_model_v1.1} parent=39 // pred_check_branch
          %932 = sbr.rel (%p930) target = $region44
        $region43: #{fashion_mnist_model_v1.1} parent=39 // pred_region
          %s933 = smul.u32 2, %s16
          %s934 = ssub.s32 5, %s933
          %p935 = scmp.lt.s32.totalorder %s934, 2
          %s936 = scalar_select %p935, %s934, 2
          %s937 = smul.u32 64, %s936
          %p938 = scmp.ne.s32.totalorder 0, %s937
          %s939 = smul.addr %s933, 4
          %s940 = scalar_lea.vmem %s5, %s939
          // Predicated region
          $region45: #{fashion_mnist_model_v1.1} parent=43 // pred_check
            %p941 = pneg %p938
          $region46: #{fashion_mnist_model_v1.1} parent=43 // pred_check_branch
            %943 = sbr.rel (%p941) target = $region48
          $region47: #{fashion_mnist_model_v1.1} parent=43 // pred_region
            // Predicated region
            $region49: #{fashion_mnist_model_v1.1} parent=47 // pred_check
              _
            $region50: #{fashion_mnist_model_v1.1} parent=47 // pred_check_branch
              %945 = sbr.rel target = $region52
            $region51: #{fashion_mnist_model_v1.1} parent=47 // pred_region
              // Predicated region
              $region71: #{fashion_mnist_model_v1.1} parent=51 // pred_check
                _
              $region72: #{fashion_mnist_model_v1.1} parent=51 // pred_check_branch
                %997 = sbr.rel (0) target = $region74
              $region73: #{fashion_mnist_model_v1.1} parent=51 // pred_region
                %s999 = ssub.s32 16, 1
                %s1000 = sshrl.u32 %s936, 1
                // While loop
                $region75: #{fashion_mnist_model_v1.1} parent=73 // loop_pre_header
                  _
                $region76: #{fashion_mnist_model_v1.1} parent=73 // loop_header
                  %s1002 = sphi 0, %s1004
                  %p1003 = scmp.ge.s32.totalorder %s1002, %s1000
                  %s1007 = sphi 0, %s1016
                  %s1008 = sphi %s929, %s1019
                  %s1009 = sphi %s940, %s1020
                $region77: #{fashion_mnist_model_v1.1} parent=73 // loop_header_branch
                  %1006 = sbr.rel (%p1003) target = $region81
                $region78: #{fashion_mnist_model_v1.1} parent=73 // loop_body
                  %v1010 = vld [vmem:[%s1008] sm:%s999]
                  %1011 = vst [vmem:[%s1009] sm:%s999] %v1010
                  %v1012 = vld [vmem:[%s1008 + $0x4] sm:%s999]
                  %1013 = vst [vmem:[%s1009 + $0x4] sm:%s999] %v1012
                  %s1014 = sadd.s32 1, %s1007
                  %p1015 = scmp.ge.s32.totalorder %s1014, %s1000
                  %s1016 = scalar_select %p1015, 0, %s1014
                  %s1017 = smul.u32 %s1016, 8
                  %s1018 = smul.u32 %s1016, 8
                  %s1019 = scalar_lea.vmem %s929, %s1017 [#allocation2]
                  %s1020 = scalar_lea.vmem %s940, %s1018
                $region79: #{fashion_mnist_model_v1.1} parent=73 // loop_footer
                  %s1004 = sadd.s32 %s1002, 1
                $region80: #{fashion_mnist_model_v1.1} parent=73 // loop_footer_branch
                  %1001 = sbr.rel target = $region76
                $region81: #{fashion_mnist_model_v1.1} parent=73 // loop_exit
                  _
                %s1021 = sshrl.u32 %s936, 1
                %s1022 = sand.u32 %s936, 1
                %s1023 = smul.u32 %s1021, 2
                %s1024 = smul.u32 4, %s1023
                %s1025 = scalar_lea.vmem %s929, %s1024 [#allocation2]
                %s1026 = smul.u32 4, %s1023
                %s1027 = scalar_lea.vmem %s940, %s1026
                // While loop
                $region82: #{fashion_mnist_model_v1.1} parent=73 // loop_pre_header
                  _
                $region83: #{fashion_mnist_model_v1.1} parent=73 // loop_header
                  %s1029 = sphi 0, %s1031
                  %p1030 = scmp.ge.s32.totalorder %s1029, %s1022
                  %s1034 = sphi 0, %s1041
                  %s1035 = sphi %s1025, %s1044
                  %s1036 = sphi %s1027, %s1045
                $region84: #{fashion_mnist_model_v1.1} parent=73 // loop_header_branch
                  %1033 = sbr.rel (%p1030) target = $region88
                $region85: #{fashion_mnist_model_v1.1} parent=73 // loop_body
                  %v1037 = vld [vmem:[%s1035] sm:%s999]
                  %1038 = vst [vmem:[%s1036] sm:%s999] %v1037
                  %s1039 = sadd.s32 1, %s1034
                  %p1040 = scmp.ge.s32.totalorder %s1039, %s1022
                  %s1041 = scalar_select %p1040, 0, %s1039
                  %s1042 = smul.u32 %s1041, 4
                  %s1043 = smul.u32 %s1041, 4
                  %s1044 = scalar_lea.vmem %s1025, %s1042 [#allocation2]
                  %s1045 = scalar_lea.vmem %s1027, %s1043
                $region86: #{fashion_mnist_model_v1.1} parent=73 // loop_footer
                  %s1031 = sadd.s32 %s1029, 1
                $region87: #{fashion_mnist_model_v1.1} parent=73 // loop_footer_branch
                  %1028 = sbr.rel target = $region83
                $region88: #{fashion_mnist_model_v1.1} parent=73 // loop_exit
                  _
              $region74: #{fashion_mnist_model_v1.1} parent=51 // pred_fallthru
                _
            $region52: #{fashion_mnist_model_v1.1} parent=47 // pred_fallthru
              _
            // Predicated region
            $region53: #{fashion_mnist_model_v1.1} parent=47 // pred_check
              _
            $region54: #{fashion_mnist_model_v1.1} parent=47 // pred_check_branch
              %947 = sbr.rel (0) target = $region56
            $region55: #{fashion_mnist_model_v1.1} parent=47 // pred_region
              %s949 = ssub.s32 16, 1
              %s950 = sshrl.u32 %s936, 1
              // While loop
              $region57: #{fashion_mnist_model_v1.1} parent=55 // loop_pre_header
                _
              $region58: #{fashion_mnist_model_v1.1} parent=55 // loop_header
                %s952 = sphi 0, %s954
                %p953 = scmp.ge.s32.totalorder %s952, %s950
                %s957 = sphi 0, %s966
                %s958 = sphi %s929, %s969
                %s959 = sphi %s940, %s970
              $region59: #{fashion_mnist_model_v1.1} parent=55 // loop_header_branch
                %956 = sbr.rel (%p953) target = $region63
              $region60: #{fashion_mnist_model_v1.1} parent=55 // loop_body
                %v960 = vld [vmem:[%s958] sm:%s949]
                %961 = vst [vmem:[%s959] sm:%s949] %v960
                %v962 = vld [vmem:[%s958 + $0x4] sm:%s949]
                %963 = vst [vmem:[%s959 + $0x4] sm:%s949] %v962
                %s964 = sadd.s32 1, %s957
                %p965 = scmp.ge.s32.totalorder %s964, %s950
                %s966 = scalar_select %p965, 0, %s964
                %s967 = smul.u32 %s966, 8
                %s968 = smul.u32 %s966, 8
                %s969 = scalar_lea.vmem %s929, %s967 [#allocation2]
                %s970 = scalar_lea.vmem %s940, %s968
              $region61: #{fashion_mnist_model_v1.1} parent=55 // loop_footer
                %s954 = sadd.s32 %s952, 1
              $region62: #{fashion_mnist_model_v1.1} parent=55 // loop_footer_branch
                %951 = sbr.rel target = $region58
              $region63: #{fashion_mnist_model_v1.1} parent=55 // loop_exit
                _
              %s971 = sshrl.u32 %s936, 1
              %s972 = sand.u32 %s936, 1
              %s973 = smul.u32 %s971, 2
              %s974 = smul.u32 4, %s973
              %s975 = scalar_lea.vmem %s929, %s974 [#allocation2]
              %s976 = smul.u32 4, %s973
              %s977 = scalar_lea.vmem %s940, %s976
              // While loop
              $region64: #{fashion_mnist_model_v1.1} parent=55 // loop_pre_header
                _
              $region65: #{fashion_mnist_model_v1.1} parent=55 // loop_header
                %s979 = sphi 0, %s981
                %p980 = scmp.ge.s32.totalorder %s979, %s972
                %s984 = sphi 0, %s991
                %s985 = sphi %s975, %s994
                %s986 = sphi %s977, %s995
              $region66: #{fashion_mnist_model_v1.1} parent=55 // loop_header_branch
                %983 = sbr.rel (%p980) target = $region70
              $region67: #{fashion_mnist_model_v1.1} parent=55 // loop_body
                %v987 = vld [vmem:[%s985] sm:%s949]
                %988 = vst [vmem:[%s986] sm:%s949] %v987
                %s989 = sadd.s32 1, %s984
                %p990 = scmp.ge.s32.totalorder %s989, %s972
                %s991 = scalar_select %p990, 0, %s989
                %s992 = smul.u32 %s991, 4
                %s993 = smul.u32 %s991, 4
                %s994 = scalar_lea.vmem %s975, %s992 [#allocation2]
                %s995 = scalar_lea.vmem %s977, %s993
              $region68: #{fashion_mnist_model_v1.1} parent=55 // loop_footer
                %s981 = sadd.s32 %s979, 1
              $region69: #{fashion_mnist_model_v1.1} parent=55 // loop_footer_branch
                %978 = sbr.rel target = $region65
              $region70: #{fashion_mnist_model_v1.1} parent=55 // loop_exit
                _
            $region56: #{fashion_mnist_model_v1.1} parent=47 // pred_fallthru
              _
          $region48: #{fashion_mnist_model_v1.1} parent=43 // pred_fallthru
            _
          %1046 = vnop
        $region44: #{fashion_mnist_model_v1.1} parent=39 // pred_fallthru
          _
      $region40: #{fashion_mnist_model_v1.1} parent=5 // pred_fallthru
        _
      %p1047 = scmp.le.s32.totalorder 2, %s11
      // Predicated region
      $region89: #{fashion_mnist_model_v1.1} parent=5 // pred_check
        %p1048 = pneg %p1047
      $region90: #{fashion_mnist_model_v1.1} parent=5 // pred_check_branch
        %1050 = sbr.rel (%p1048) target = $region92
      $region91: #{fashion_mnist_model_v1.1} parent=5 // pred_region
        %s1051 = ssub.s32 %s11, 2
        // Predicated region
        $region93: #{fashion_mnist_model_v1.1} parent=91 // pred_check
          %p1052 = pneg %p150
        $region94: #{fashion_mnist_model_v1.1} parent=91 // pred_check_branch
          %1054 = sbr.rel (%p1052) target = $region96
        $region95: #{fashion_mnist_model_v1.1} parent=91 // pred_region
          %s1055 = sand.u32 %s135, 1
          %s1056 = sand.u32 %s135, 1
          %s1057 = smul.addr %s1056, 8
          %s1058 = scalar_lea.vmem [#allocation2], %s1057
        $region96: #{fashion_mnist_model_v1.1} parent=91 // pred_fallthru
          _
      $region92: #{fashion_mnist_model_v1.1} parent=5 // pred_fallthru
        _
    $region6: #{fashion_mnist_model_v1.1} parent=1 // loop_footer
      %s15 = sadd.s32 1, %s11
    $region7: #{fashion_mnist_model_v1.1} parent=1 // loop_footer_branch
      %10 = sbr.rel target = $region3
    $region8: #{fashion_mnist_model_v1.1} parent=1 // loop_exit
      _

</llo_original>
